<compile_context>
chip_gen: v7x
topology: tpu7x:2x2x1
jax: 0.10.0
libtpu: 0.0.40
codegen_flags: <defaults>
</compile_context>

<pallas_src>
import jax
import jax.numpy as jnp
from jax.experimental import pallas as pl
from jax.experimental.pallas import tpu as pltpu


def transpose_conv_block_kernel(x_ref, w_ref, o_ref):
    # x_ref: (1, Cin, HW)      one sample, NCHW with spatial flattened
    # w_ref: (4*Cout, Cin)     fused taps, row r = (di*2 + dj)*Cout + c
    # o_ref: (1, 4, Cout, HW)  per-tap, per-channel output (lane-dense HW)
    _, _, cout, hw = o_ref.shape
    x = x_ref[0]                                                   # (Cin, HW)

    # Single fused MXU matmul for all 4 transpose-conv taps.
    y = jnp.dot(w_ref[...], x, preferred_element_type=jnp.float32)  # (4*Cout, HW)
    y = y.reshape(4, cout, hw)

    # InstanceNorm2d (affine=False, eps=1e-5, biased variance): stats per
    # (sample, channel) over all 4*HW output pixels, then LeakyReLU(0.2).
    mean = jnp.mean(y, axis=(0, 2), keepdims=True)                 # (1, Cout, 1)
    var = jnp.mean((y - mean) ** 2, axis=(0, 2), keepdims=True)    # (1, Cout, 1)
    y_n = (y - mean) * jax.lax.rsqrt(var + 1e-5)
    o_ref[0] = jnp.where(y_n >= 0, y_n, 0.2 * y_n)


def transpose_conv_block(x_nchw, weight, bias=None):
    """x_nchw: (N, Cin, H, W); weight: (Cin, Cout, 2, 2); bias: (Cout,) or None.

    Returns (N, Cout, 2H, 2W). `bias` is accepted for API parity with
    nn.ConvTranspose2d but unused: it is cancelled by InstanceNorm2d(affine=False).
    """
    del bias
    N, Cin, H, W = x_nchw.shape
    Cout = weight.shape[1]
    HW = H * W

    # Zero-cost input glue: NCHW is already channel-major; flatten spatial only.
    x_flat = x_nchw.reshape(N, Cin, HW)
    # Fused weight: (Cin, Cout, 2, 2) -> (4*Cout, Cin), tap-major rows.
    wt = jnp.transpose(weight, (2, 3, 1, 0)).reshape(4 * Cout, Cin)

    y = pl.pallas_call(
        transpose_conv_block_kernel,
        out_shape=jax.ShapeDtypeStruct((N, 4, Cout, HW), jnp.float32),
        grid=(N,),
        in_specs=[
            pl.BlockSpec((1, Cin, HW), lambda n: (n, 0, 0)),
            pl.BlockSpec((4 * Cout, Cin), lambda n: (0, 0)),
        ],
        out_specs=pl.BlockSpec((1, 4, Cout, HW), lambda n: (n, 0, 0, 0)),
        compiler_params=pltpu.CompilerParams(
            dimension_semantics=("parallel",)),
    )(x_flat, wt)

    # Output glue: single transpose interleaving taps into spatial positions.
    # (n, di, dj, c, i, j) -> (n, c, i, di, j, dj) -> (N, Cout, 2H, 2W)
    y = y.reshape(N, 2, 2, Cout, H, W)
    y = jnp.transpose(y, (0, 3, 4, 1, 5, 2))
    return y.reshape(N, Cout, 2 * H, 2 * W)


def reference(x_nchw, weight, bias):
    """Pure-JAX reference matching PyTorch semantics (bias included)."""
    N, Cin, H, W = x_nchw.shape
    Cout = weight.shape[1]
    # ConvTranspose2d(k=2, s=2): out[n,o,2i+di,2j+dj] = sum_c x[n,c,i,j]*w[c,o,di,dj]
    y = jnp.einsum('ncij,cokl->noikjl', x_nchw, weight)
    y = y.reshape(N, Cout, 2 * H, 2 * W) + bias[None, :, None, None]
    # InstanceNorm2d (affine=False, eps=1e-5, biased var)
    mean = jnp.mean(y, axis=(2, 3), keepdims=True)
    var = jnp.mean((y - mean) ** 2, axis=(2, 3), keepdims=True)
    y = (y - mean) * jax.lax.rsqrt(var + 1e-5)
    # LeakyReLU(0.2)
    return jnp.where(y >= 0, y, 0.2 * y)


if __name__ == "__main__":
    in_chans, out_chans = 4, 8
    N, H, W = 2, 16, 16

    key = jax.random.PRNGKey(0)
    kx, kw, kb = jax.random.split(key, 3)
    x = jax.random.normal(kx, (N, in_chans, H, W), dtype=jnp.float32)
    # ConvTranspose2d weight shape: (in_chans, out_chans, kH, kW)
    weight = 0.1 * jax.random.normal(kw, (in_chans, out_chans, 2, 2),
                                     dtype=jnp.float32)
    bias = 0.1 * jax.random.normal(kb, (out_chans,), dtype=jnp.float32)

    out = transpose_conv_block(x, weight, bias)
    out = jax.block_until_ready(out)

    ref = jax.block_until_ready(reference(x, weight, bias))
    assert out.shape == (N, out_chans, 2 * H, 2 * W), out.shape
    assert jnp.allclose(out, ref, atol=1e-4, rtol=1e-4), \
        float(jnp.max(jnp.abs(out - ref)))

    print("KERNEL_OK")
</pallas_src>

<mosaic_0001>
module attributes {stable_mosaic.version = 11 : i64} {
  func.func @transpose_conv_block_kernel(%arg0: i32, %arg1: memref<1x4x256xf32, #tpu.memory_space<vmem>>, %arg2: memref<32x4xf32, #tpu.memory_space<vmem>>, %arg3: memref<1x4x8x256xf32, #tpu.memory_space<vmem>>) attributes {dimension_semantics = [#tpu.dimension_semantics<parallel>], iteration_bounds = array<i64: 2>, scalar_prefetch = 0 : i64, scratch_operands = 0 : i64, tpu.core_type = #tpu.core_type<tc>, window_params = [{transform_indices = @transform_0, window_bounds = array<i64: 1, 4, 256>}, {pipeline_mode = #tpu.pipeline_mode<synchronous>, transform_indices = @transform_1, window_bounds = array<i64: 32, 4>}, {transform_indices = @transform_2, window_bounds = array<i64: 1, 4, 8, 256>}]} {
    %c0 = arith.constant 0 : index
    %c0_0 = arith.constant 0 : index
    %c0_1 = arith.constant 0 : index
    %0 = vector.load %arg1[%c0, %c0_0, %c0_1] : memref<1x4x256xf32, #tpu.memory_space<vmem>>, vector<1x4x256xf32>
    %1 = vector.shape_cast %0 : vector<1x4x256xf32> to vector<4x256xf32>
    %c0_2 = arith.constant 0 : index
    %c0_3 = arith.constant 0 : index
    %2 = vector.load %arg2[%c0_2, %c0_3] : memref<32x4xf32, #tpu.memory_space<vmem>>, vector<32x4xf32>
    %cst = arith.constant dense<0.000000e+00> : vector<32x256xf32>
    %3 = tpu.matmul %2, %1, %cst {dimension_numbers = #tpu.dot_dimension_numbers<[1], [0], [0], [1], [0, 0, 1, 1], [], []>} : vector<32x4xf32>, vector<4x256xf32>, vector<32x256xf32> -> vector<32x256xf32>
    %4 = vector.shape_cast %3 : vector<32x256xf32> to vector<4x8x256xf32>
    %cst_4 = arith.constant dense<0.000000e+00> : vector<8xf32>
    %5 = vector.multi_reduction <add>, %4, %cst_4 [0, 2] : vector<4x8x256xf32> to vector<8xf32>
    %6 = vector.shape_cast %5 : vector<8xf32> to vector<1x8x1xf32>
    %cst_5 = arith.constant 1.024000e+03 : f32
    %7 = vector.broadcast %cst_5 : f32 to vector<1x8x1xf32>
    %8 = arith.divf %6, %7 : vector<1x8x1xf32>
    %9 = vector.broadcast %8 : vector<1x8x1xf32> to vector<4x8x256xf32>
    %10 = arith.subf %4, %9 : vector<4x8x256xf32>
    %11 = arith.mulf %10, %10 : vector<4x8x256xf32>
    %cst_6 = arith.constant dense<0.000000e+00> : vector<8xf32>
    %12 = vector.multi_reduction <add>, %11, %cst_6 [0, 2] : vector<4x8x256xf32> to vector<8xf32>
    %13 = vector.shape_cast %12 : vector<8xf32> to vector<1x8x1xf32>
    %cst_7 = arith.constant 1.024000e+03 : f32
    %14 = vector.broadcast %cst_7 : f32 to vector<1x8x1xf32>
    %15 = arith.divf %13, %14 : vector<1x8x1xf32>
    %16 = vector.broadcast %8 : vector<1x8x1xf32> to vector<4x8x256xf32>
    %17 = arith.subf %4, %16 : vector<4x8x256xf32>
    %cst_8 = arith.constant 9.99999974E-6 : f32
    %18 = vector.broadcast %cst_8 : f32 to vector<1x8x1xf32>
    %19 = arith.addf %15, %18 : vector<1x8x1xf32>
    %20 = math.rsqrt %19 : vector<1x8x1xf32>
    %21 = vector.broadcast %20 : vector<1x8x1xf32> to vector<4x8x256xf32>
    %22 = arith.mulf %17, %21 : vector<4x8x256xf32>
    %cst_9 = arith.constant 0.000000e+00 : f32
    %23 = vector.broadcast %cst_9 : f32 to vector<4x8x256xf32>
    %24 = arith.cmpf oge, %22, %23 : vector<4x8x256xf32>
    %cst_10 = arith.constant 2.000000e-01 : f32
    %25 = vector.broadcast %cst_10 : f32 to vector<4x8x256xf32>
    %26 = arith.mulf %25, %22 : vector<4x8x256xf32>
    %27 = arith.select %24, %22, %26 : vector<4x8x256xi1>, vector<4x8x256xf32>
    %c0_11 = arith.constant 0 : index
    %c0_12 = arith.constant 0 : index
    %c0_13 = arith.constant 0 : index
    %c0_14 = arith.constant 0 : index
    %28 = vector.load %arg3[%c0_11, %c0_12, %c0_13, %c0_14] : memref<1x4x8x256xf32, #tpu.memory_space<vmem>>, vector<1x4x8x256xf32>
    %29 = vector.shape_cast %28 : vector<1x4x8x256xf32> to vector<4x8x256xf32>
    %30 = vector.shape_cast %27 : vector<4x8x256xf32> to vector<1x4x8x256xf32>
    tpu.vector_store %arg3[%c0_11, %c0_12, %c0_13, %c0_14], %30 {strides = array<i32>} : memref<1x4x8x256xf32, #tpu.memory_space<vmem>>, vector<1x4x8x256xf32>,
    return
  }
  func.func @transform_0(%arg0: i32) -> (i32, i32, i32) {
    %c0_i32 = arith.constant 0 : i32
    %c0_i32_0 = arith.constant 0 : i32
    %c0_i32_1 = arith.constant 0 : i32
    return %arg0, %c0_i32, %c0_i32_0 : i32, i32, i32
  }
  func.func @transform_1(%arg0: i32) -> (i32, i32) {
    %c0_i32 = arith.constant 0 : i32
    %c0_i32_0 = arith.constant 0 : i32
    %c0_i32_1 = arith.constant 0 : i32
    return %c0_i32, %c0_i32_0 : i32, i32
  }
  func.func @transform_2(%arg0: i32) -> (i32, i32, i32, i32) {
    %c0_i32 = arith.constant 0 : i32
    %c0_i32_0 = arith.constant 0 : i32
    %c0_i32_1 = arith.constant 0 : i32
    %c0_i32_2 = arith.constant 0 : i32
    return %arg0, %c0_i32, %c0_i32_0, %c0_i32_1 : i32, i32, i32, i32
  }
}

</mosaic_0001>

<llo_original>
// kernel: tpu_custom_call.1
$region0: #{tpu_custom_call.1}
  #allocation0 [shape = 'u32[]', space=smem, size = 0x4, offset = 0x4, fixed_abs, tag = 'smem constant byte address 0x4 - core index']
  #allocation1 [shape = 'u32[144,128]{1,0:T(1,128)}', space=vmem, size = 0x12000, scoped, tag = 'internal scratch']
  %s0 = inlined_call_operand.vmem [shape: f32[2,4,256], index: 0, kind: input, shape index: {}]
  %s1 = inlined_call_operand.vmem [shape: f32[32,4], index: 1, kind: input, shape index: {}]
  %s2 = inlined_call_operand.hbm [shape: f32[2,4,8,256], index: 2, kind: output, shape index: {}]
  %s3 = sld [smem:[#allocation0]]
  $region41: #{tpu_custom_call.1} parent=0
    _
  %s5 = ssub.s32 1, %s3
  %s6 = scalar_select 0, %s5, %s3
  $region1: #{tpu_custom_call.1} parent=0
    #allocation2 [shape = 'u8[65536]{0}', space=vmem, size = 0x10000, scoped, tag = 'output window, operand 0']
    #allocation3 [shape = 's32[2]{0}', space=sflag, size = 0x8, scoped, tag = 'scoped memory for tpu_custom_call.1']
    %7 = vsyncpa [#allocation3], 0
    %s8 = scalar_lea.sflag [#allocation3], 1
    %9 = vsyncpa %s8, 0
    loop: start=0, step=1, limit=4
    $region2: #{tpu_custom_call.1} parent=1 // loop_pre_header
      _
    $region3: #{tpu_custom_call.1} parent=1 // loop_header
      %s11 = sphi 0, %s15
      %p12 = scmp.ge.s32.totalorder %s11, 4
      %s21 = sphi 0, %s23
      %s24 = sphi 0, %s21
      %s25 = sphi 0, %s24
      %s41 = sphi 0, %s25
      %s45 = sphi 0, %s45
      %s47 = sphi 0, %s45
      %s48 = sphi 0, %s47
      %s62 = sphi 0, %s48
      %s68 = sphi 0, %s70
      %s71 = sphi 0, %s68
      %s72 = sphi 0, %s71
      %s88 = sphi 0, %s72
    $region4: #{tpu_custom_call.1} parent=1 // loop_header_branch
      %14 = sbr.rel (%p12) target = $region8
    $region5: #{tpu_custom_call.1} parent=1 // loop_body
      %s16 = ssub.s32 %s11, 1
      %s17 = ssub.s32 %s11, 2
      %s18 = sadd.s32 %s11, 1
      %s19 = ssub.s32 %s11, %s18
      %p20 = scmp.eq.s32.totalorder %s19, 0
      %s22 = sadd.s32 %s21, 1
      %s23 = scalar_select %p20, %s21, %s22
      %p26 = pneg %p20
      %p27 = scmp.eq.s32.totalorder %s11, 1
      %p28 = por %p26, %p27
      %p29 = scmp.ne.s32.totalorder %s21, %s24
      %p30 = scmp.eq.s32.totalorder %s11, 0
      %p31 = por %p29, %p30
      %p32 = scmp.ne.s32.totalorder %s21, %s24
      %p33 = scmp.eq.s32.totalorder %s16, 1
      %p34 = por %p32, %p33
      %p35 = scmp.ne.s32.totalorder %s24, %s25
      %p36 = scmp.eq.s32.totalorder %s16, 0
      %p37 = por %p35, %p36
      %p38 = scmp.ne.s32.totalorder %s24, %s25
      %p39 = scmp.eq.s32.totalorder %s17, 1
      %p40 = por %p38, %p39
      %p42 = scmp.ne.s32.totalorder %s25, %s41
      %p43 = scmp.eq.s32.totalorder %s17, 0
      %p44 = por %p42, %p43
      %s46 = sadd.s32 %s45, 1
      %p49 = scmp.eq.s32.totalorder %s11, 1
      %p50 = scmp.ne.s32.totalorder %s45, %s47
      %p51 = scmp.eq.s32.totalorder %s11, 0
      %p52 = por %p50, %p51
      %p53 = scmp.ne.s32.totalorder %s45, %s47
      %p54 = scmp.eq.s32.totalorder %s16, 1
      %p55 = por %p53, %p54
      %p56 = scmp.ne.s32.totalorder %s47, %s48
      %p57 = scmp.eq.s32.totalorder %s16, 0
      %p58 = por %p56, %p57
      %p59 = scmp.ne.s32.totalorder %s47, %s48
      %p60 = scmp.eq.s32.totalorder %s17, 1
      %p61 = por %p59, %p60
      %p63 = scmp.ne.s32.totalorder %s48, %s62
      %p64 = scmp.eq.s32.totalorder %s17, 0
      %p65 = por %p63, %p64
      %s66 = ssub.s32 %s11, %s18
      %p67 = scmp.eq.s32.totalorder %s66, 0
      %s69 = sadd.s32 %s68, 1
      %s70 = scalar_select %p67, %s68, %s69
      %p73 = pneg %p67
      %p74 = scmp.eq.s32.totalorder %s11, 1
      %p75 = por %p73, %p74
      %p76 = scmp.ne.s32.totalorder %s68, %s71
      %p77 = scmp.eq.s32.totalorder %s11, 0
      %p78 = por %p76, %p77
      %p79 = scmp.ne.s32.totalorder %s68, %s71
      %p80 = scmp.eq.s32.totalorder %s16, 1
      %p81 = por %p79, %p80
      %p82 = scmp.ne.s32.totalorder %s71, %s72
      %p83 = scmp.eq.s32.totalorder %s16, 0
      %p84 = por %p82, %p83
      %p85 = scmp.ne.s32.totalorder %s71, %s72
      %p86 = scmp.eq.s32.totalorder %s17, 1
      %p87 = por %p85, %p86
      %p89 = scmp.ne.s32.totalorder %s72, %s88
      %p90 = scmp.eq.s32.totalorder %s17, 0
      %p91 = por %p89, %p90
      %p92 = scmp.le.s32.totalorder 1, %s11
      %p93 = scmp.lt.s32.totalorder %s11, 3
      %p94 = pnand %p92, %p93
      %p95 = pneg %p94
      // Predicated region
      $region9: #{tpu_custom_call.1} parent=5 // pred_check
        _
      $region10: #{tpu_custom_call.1} parent=5 // pred_check_branch
        %97 = sbr.rel (%p94) target = $region12
      $region11: #{tpu_custom_call.1} parent=5 // pred_region
        %s98 = ssub.s32 %s11, 1
        // Predicated region
        $region13: #{tpu_custom_call.1} parent=11 // pred_check
          %p99 = pneg %p58
        $region14: #{tpu_custom_call.1} parent=11 // pred_check_branch
          %101 = sbr.rel (%p99) target = $region16
        $region15: #{tpu_custom_call.1} parent=11 // pred_region
          _
        $region16: #{tpu_custom_call.1} parent=11 // pred_fallthru
          _
      $region12: #{tpu_custom_call.1} parent=5 // pred_fallthru
        _
      %p102 = scmp.lt.s32.totalorder %s11, 2
      // Predicated region
      $region17: #{tpu_custom_call.1} parent=5 // pred_check
        %p103 = pneg %p102
      $region18: #{tpu_custom_call.1} parent=5 // pred_check_branch
        %105 = sbr.rel (%p103) target = $region20
      $region19: #{tpu_custom_call.1} parent=5 // pred_region
        // Predicated region
        $region21: #{tpu_custom_call.1} parent=19 // pred_check
          %p106 = pneg %p31
        $region22: #{tpu_custom_call.1} parent=19 // pred_check_branch
          %108 = sbr.rel (%p106) target = $region24
        $region23: #{tpu_custom_call.1} parent=19 // pred_region
          %p109 = scmp.lt.s32.totalorder %s11, 1
          %s110 = scalar_select %p109, %s11, 1
          %s111 = smul.addr %s110, 2
          %s112 = smul.addr %s111, 4
          %s113 = scalar_lea.vmem %s0, %s112
        $region24: #{tpu_custom_call.1} parent=19 // pred_fallthru
          _
      $region20: #{tpu_custom_call.1} parent=5 // pred_fallthru
        _
      %p114 = scmp.le.s32.totalorder 1, %s11
      %p115 = scmp.lt.s32.totalorder %s11, 3
      %p116 = pnand %p114, %p115
      %p117 = pneg %p116
      // Predicated region
      $region25: #{tpu_custom_call.1} parent=5 // pred_check
        _
      $region26: #{tpu_custom_call.1} parent=5 // pred_check_branch
        %119 = sbr.rel (%p116) target = $region28
      $region27: #{tpu_custom_call.1} parent=5 // pred_region
        %s120 = ssub.s32 %s11, 1
        %p121 = scmp.lt.s32.totalorder %s16, 1
        %s122 = scalar_select %p121, %s16, 1
        %s123 = smul.addr %s122, 2
        %s124 = smul.addr %s123, 4
        %s125 = scalar_lea.vmem %s0, %s124
        %p126 = pneg %p37
        %p127 = pneg %p34
        %p128 = pneg %p58
        %p129 = pneg %p55
        %p130 = pneg %p84
        %p131 = pneg %p81
        %s132 = sand.u32 %s71, 1
        %s133 = scalar_lea.sflag [#allocation3], %s132
        %s134 = sand.u32 %s71, 1
        %s135 = smul.addr %s134, 64
        %s136 = scalar_lea.vmem [#allocation2], %s135
        %p137 = scmp.lt.s32.totalorder %s16, 1
        %s138 = scalar_select %p137, %s16, 1
        %s139 = smul.addr %s138, 2
        %s140 = smul.addr %s139, 4
        %s141 = scalar_lea.vmem %s0, %s140
        %v142 = vld [vmem:[%s141] sm:$0xff]
        %v143 = vld [vmem:[%s1] sm:$0xff]
        %v144 = vld [vmem:[%s1 + $0x8] sm:$0xff]
        %v145 = vld [vmem:[%s1 + $0x10] sm:$0xff]
        %v146 = vld [vmem:[%s1 + $0x18] sm:$0xff]
        %v148 = vcombine.high %v142, %v142
        %vm149 = vcmask 31744
        %v151 = vsel %vm149, %v143, 0
        %v154 = vsel %vm149, %v144, 0
        %v157 = vsel %vm149, %v145, 0
        %v160 = vsel %vm149, %v146, 0
        %vm162 = vcmask 1043456
        %v163 = vsel %vm162, %v142, 0
        %v165 = vsel %vm162, %v148, 0
        %167 = vmatprep.subr.mxu0 %v165
        %168 = vmatpush1.msra.mxu0 %v163
        %169 = vmatprep.subr.mxu0 0.0
        %170 = vmatpush1.msra.mxu0 0.0
        %171 = vmatprep.subr.mxu0 0.0
        %172 = vmatpush1.msra.mxu0 0.0
        %173 = vmatprep.subr.mxu0 0.0
        %174 = vmatpush1.msra.mxu0 0.0
        %175 = vmatprep.subr.mxu0 0.0
        %176 = vmatpush1.msra.mxu0 0.0
        %177 = vmatprep.subr.mxu0 0.0
        %178 = vmatpush1.msra.mxu0 0.0
        %179 = vmatprep.subr.mxu0 0.0
        %180 = vmatpush1.msra.mxu0 0.0
        %181 = vmatprep.subr.mxu0 0.0
        %182 = vmatpush1.msra.mxu0 0.0
        %183 = vmatprep.subr.mxu0 0.0
        %184 = vmatpush1.msra.mxu0 0.0
        %185 = vmatprep.subr.mxu0 0.0
        %186 = vmatpush1.msra.mxu0 0.0
        %187 = vmatprep.subr.mxu0 0.0
        %188 = vmatpush1.msra.mxu0 0.0
        %189 = vmatprep.subr.mxu0 0.0
        %190 = vmatpush1.msra.mxu0 0.0
        %191 = vmatprep.subr.mxu0 0.0
        %192 = vmatpush1.msra.mxu0 0.0
        %193 = vmatprep.subr.mxu0 0.0
        %194 = vmatpush1.msra.mxu0 0.0
        %195 = vmatprep.subr.mxu0 0.0
        %196 = vmatpush1.msra.mxu0 0.0
        %197 = vmatprep.subr.mxu0 0.0
        %198 = vmatpush1.msra.mxu0 0.0
        %199 = vmatprep.subr.mxu0 0.0
        %200 = vmatpush1.msra.mxu0 0.0
        %201 = vmatprep.subr.mxu0 0.0
        %202 = vmatpush1.msra.mxu0 0.0
        %203 = vmatprep.subr.mxu0 0.0
        %204 = vmatpush1.msra.mxu0 0.0
        %205 = vmatprep.subr.mxu0 0.0
        %206 = vmatpush1.msra.mxu0 0.0
        %207 = vmatprep.subr.mxu0 0.0
        %208 = vmatpush1.msra.mxu0 0.0
        %209 = vmatprep.subr.mxu0 0.0
        %210 = vmatpush1.msra.mxu0 0.0
        %211 = vmatprep.subr.mxu0 0.0
        %212 = vmatpush1.msra.mxu0 0.0
        %213 = vmatprep.subr.mxu0 0.0
        %214 = vmatpush1.msra.mxu0 0.0
        %215 = vmatprep.subr.mxu0 0.0
        %216 = vmatpush1.msra.mxu0 0.0
        %217 = vmatprep.subr.mxu0 0.0
        %218 = vmatpush1.msra.mxu0 0.0
        %219 = vmatprep.subr.mxu0 0.0
        %220 = vmatpush1.msra.mxu0 0.0
        %221 = vmatprep.subr.mxu0 0.0
        %222 = vmatpush1.msra.mxu0 0.0
        %223 = vmatprep.subr.mxu0 0.0
        %224 = vmatpush1.msra.mxu0 0.0
        %225 = vmatprep.subr.mxu0 0.0
        %226 = vmatpush1.msra.mxu0 0.0
        %227 = vmatprep.subr.mxu0 0.0
        %228 = vmatpush1.msra.mxu0 0.0
        %229 = vmatprep.subr.mxu0 0.0
        %230 = vmatpush1.msra.mxu0 0.0
        %231 = vmatprep.mubr.f32.mxu0 0.0
        %232 = vmatmul.mubr.f32.gmra.mrb[0].mxu0 %v151
        %v233 = vpop.f32.mrb[0].mxu0
        %v234 = vadd.f32 0.0, %v233
        %v235 = vpop.f32.mrb[0].mxu0
        %v236 = vadd.f32 0.0, %v235
        %237 = vmatprep.mubr.f32.mxu0 0.0
        %238 = vmatmul.mubr.f32.gmra.mrb[0].mxu0 %v154
        %v239 = vpop.f32.mrb[0].mxu0
        %v240 = vadd.f32 0.0, %v239
        %v241 = vpop.f32.mrb[0].mxu0
        %v242 = vadd.f32 0.0, %v241
        %243 = vmatprep.mubr.f32.mxu0 0.0
        %244 = vmatmul.mubr.f32.gmra.mrb[0].mxu0 %v157
        %v245 = vpop.f32.mrb[0].mxu0
        %v246 = vadd.f32 0.0, %v245
        %v247 = vpop.f32.mrb[0].mxu0
        %v248 = vadd.f32 0.0, %v247
        %249 = vmatprep.mubr.f32.mxu0 0.0
        %250 = vmatmul.mubr.f32.gmra.mrb[0].mxu0 %v160
        %v251 = vpop.f32.mrb[0].mxu0
        %v252 = vadd.f32 0.0, %v251
        %v253 = vpop.f32.mrb[0].mxu0
        %v254 = vadd.f32 0.0, %v253
        %255 = vdwg.mxu0
        %v256 = vadd.f32 %v234, %v236
        %v257 = vadd.f32 %v256, %v240
        %v258 = vadd.f32 %v257, %v242
        %v259 = vadd.f32 %v258, %v246
        %v260 = vadd.f32 %v259, %v248
        %v261 = vadd.f32 %v260, %v252
        %v262 = vadd.f32 %v261, %v254
        %263 = vadd.xlane.f32.xlu0 %v262
        %v264 = vpop.xlane.xlu0 %263
        %v265 = vrcp.pop 1024.0
        %v266 = vmul.f32 %v264, %v265
        %v267 = vsub.f32 %v234, %v266
        %v268 = vsub.f32 %v236, %v266
        %v269 = vsub.f32 %v240, %v266
        %v270 = vsub.f32 %v242, %v266
        %v271 = vsub.f32 %v246, %v266
        %v272 = vsub.f32 %v248, %v266
        %v273 = vsub.f32 %v252, %v266
        %v274 = vsub.f32 %v254, %v266
        %v275 = vmul.f32 %v267, %v267
        %v276 = vmul.f32 %v268, %v268
        %v277 = vmul.f32 %v269, %v269
        %v278 = vmul.f32 %v270, %v270
        %v279 = vmul.f32 %v271, %v271
        %v280 = vmul.f32 %v272, %v272
        %v281 = vmul.f32 %v273, %v273
        %v282 = vmul.f32 %v274, %v274
        %v283 = vadd.f32 %v275, %v276
        %v284 = vadd.f32 %v283, %v277
        %v285 = vadd.f32 %v284, %v278
        %v286 = vadd.f32 %v285, %v279
        %v287 = vadd.f32 %v286, %v280
        %v288 = vadd.f32 %v287, %v281
        %v289 = vadd.f32 %v288, %v282
        %290 = vadd.xlane.f32.xlu0 %v289
        %v291 = vpop.xlane.xlu0 %290
        %v292 = vmul.f32 %v291, %v265
        %v293 = vadd.f32 %v292, 1e-05
        %v294 = vrsqrt.pop %v293
        %v295 = vmul.f32 %v267, %v294
        %v296 = vmul.f32 %v268, %v294
        %v297 = vmul.f32 %v269, %v294
        %v298 = vmul.f32 %v270, %v294
        %v299 = vmul.f32 %v271, %v294
        %v300 = vmul.f32 %v272, %v294
        %v301 = vmul.f32 %v273, %v294
        %v302 = vmul.f32 %v274, %v294
        %vm303 = vcmp.ge.f32.partialorder %v295, 0.0
        %vm304 = vcmp.ge.f32.partialorder %v296, 0.0
        %vm305 = vcmp.ge.f32.partialorder %v297, 0.0
        %vm306 = vcmp.ge.f32.partialorder %v298, 0.0
        %vm307 = vcmp.ge.f32.partialorder %v299, 0.0
        %vm308 = vcmp.ge.f32.partialorder %v300, 0.0
        %vm309 = vcmp.ge.f32.partialorder %v301, 0.0
        %vm310 = vcmp.ge.f32.partialorder %v302, 0.0
        %v311 = vmul.f32 %v295, 0.2
        %v312 = vmul.f32 %v296, 0.2
        %v313 = vmul.f32 %v297, 0.2
        %v314 = vmul.f32 %v298, 0.2
        %v315 = vmul.f32 %v299, 0.2
        %v316 = vmul.f32 %v300, 0.2
        %v317 = vmul.f32 %v301, 0.2
        %v318 = vmul.f32 %v302, 0.2
        %v319 = vsel %vm303, %v295, %v311
        %v320 = vsel %vm304, %v296, %v312
        %v321 = vsel %vm305, %v297, %v313
        %v322 = vsel %vm306, %v298, %v314
        %v323 = vsel %vm307, %v299, %v315
        %v324 = vsel %vm308, %v300, %v316
        %v325 = vsel %vm309, %v301, %v317
        %v326 = vsel %vm310, %v302, %v318
        %327 = vst [vmem:[%s136] sm:$0xff] %v319
        %328 = vst [vmem:[%s136 + $0x8] sm:$0xff] %v320
        %329 = vst [vmem:[%s136 + $0x10] sm:$0xff] %v321
        %330 = vst [vmem:[%s136 + $0x18] sm:$0xff] %v322
        %331 = vst [vmem:[%s136 + $0x20] sm:$0xff] %v323
        %332 = vst [vmem:[%s136 + $0x28] sm:$0xff] %v324
        %333 = vst [vmem:[%s136 + $0x30] sm:$0xff] %v325
        %334 = vst [vmem:[%s136 + $0x38] sm:$0xff] %v326
        %s335 = sand.u32 %s71, 1
        %s336 = scalar_lea.sflag [#allocation3], %s335
        %s337 = sand.u32 %s71, 1
        %s338 = smul.addr %s337, 64
        %s339 = scalar_lea.vmem [#allocation2], %s338
        // Predicated region
        $region29: #{tpu_custom_call.1} parent=27 // pred_check
          %p340 = pneg %p81
        $region30: #{tpu_custom_call.1} parent=27 // pred_check_branch
          %342 = sbr.rel (%p340) target = $region32
        $region31: #{tpu_custom_call.1} parent=27 // pred_region
          %s344 = ssub.s32 1024, 1024
          %345 = vsyncadd %s336, %s344
          %s346 = smul.addr %s16, 8
          %s347 = smul.addr %s346, 128
          %s348 = scalar_lea.hbm %s2, %s347
          %s349 = sshll.u32 %s339, 4
          %s350 = int_to_ptr.vmem [resolvable:$true] %s349
          %355 = dma.vmem_to_hbm [thread:$0]  %s350, 1024, %s348, %s336, 256, 256, 16
        $region32: #{tpu_custom_call.1} parent=27 // pred_fallthru
          _
      $region28: #{tpu_custom_call.1} parent=5 // pred_fallthru
        _
      %p356 = scmp.le.s32.totalorder 2, %s11
      // Predicated region
      $region33: #{tpu_custom_call.1} parent=5 // pred_check
        %p357 = pneg %p356
      $region34: #{tpu_custom_call.1} parent=5 // pred_check_branch
        %359 = sbr.rel (%p357) target = $region36
      $region35: #{tpu_custom_call.1} parent=5 // pred_region
        %s360 = ssub.s32 %s11, 2
        // Predicated region
        $region37: #{tpu_custom_call.1} parent=35 // pred_check
          %p361 = pneg %p87
        $region38: #{tpu_custom_call.1} parent=35 // pred_check_branch
          %363 = sbr.rel (%p361) target = $region40
        $region39: #{tpu_custom_call.1} parent=35 // pred_region
          %s364 = sand.u32 %s72, 1
          %s365 = scalar_lea.sflag [#allocation3], %s364
          %s366 = sand.u32 %s72, 1
          %s367 = smul.addr %s366, 64
          %s368 = scalar_lea.vmem [#allocation2], %s367
          %369 = dma.done %s365, 1024
        $region40: #{tpu_custom_call.1} parent=35 // pred_fallthru
          _
      $region36: #{tpu_custom_call.1} parent=5 // pred_fallthru
        _
    $region6: #{tpu_custom_call.1} parent=1 // loop_footer
      %s15 = sadd.s32 1, %s11
    $region7: #{tpu_custom_call.1} parent=1 // loop_footer_branch
      %10 = sbr.rel target = $region3
    $region8: #{tpu_custom_call.1} parent=1 // loop_exit
      _
    %370 = vsyncpa [#allocation3], 1
    %s371 = scalar_lea.sflag [#allocation3], 1
    %372 = vsyncpa %s371, 1

</llo_original>
